<compile_context>
chip_gen: v5e
topology: v5e:2x2
jax: 0.10.0
libtpu: 0.0.40
codegen_flags: <defaults>
</compile_context>

<pallas_src>
import functools

import jax
import jax.numpy as jnp
from jax.experimental import pallas as pl
from jax.experimental.pallas import tpu as pltpu


def _vmem_capacity_bytes():
    """Physical VMEM per TensorCore; conservative fallback if query unavailable."""
    try:
        return int(pltpu.get_tpu_info().vmem_capacity_bytes)
    except Exception:
        return 64 << 20  # v7x per-TC VMEM (smallest of current generations)


def _make_kernel(approx_sigmoid: bool):
    def kernel(x_ref,
               w1_ref, b1_ref,
               w2_ref, b2_ref,
               w3_ref, b3_ref,
               w4_ref, b4_ref,
               o_ref):
        x = x_ref[...]                                        # (tb, D)

        # encoder: Linear(D, 4) + ReLU   (f32 accumulation on the MXU)
        h = jnp.dot(x, w1_ref[...], preferred_element_type=jnp.float32) + b1_ref[...]
        h = jnp.maximum(h, 0.0)

        # encoder: Linear(4, 2) + ReLU
        h = jnp.dot(h, w2_ref[...], preferred_element_type=jnp.float32) + b2_ref[...]
        h = jnp.maximum(h, 0.0)

        # decoder: Linear(2, 4) + ReLU
        h = jnp.dot(h, w3_ref[...], preferred_element_type=jnp.float32) + b3_ref[...]
        h = jnp.maximum(h, 0.0)

        # decoder: Linear(4, D) + Sigmoid
        y = jnp.dot(h, w4_ref[...], preferred_element_type=jnp.float32) + b4_ref[...]
        if approx_sigmoid:
            # EUP exp + approx reciprocal (bf16-output path; keeps kernel DMA-bound on v7x)
            o_ref[...] = pl.reciprocal(1.0 + jnp.exp(-y), approx=True).astype(o_ref.dtype)
        else:
            o_ref[...] = jax.nn.sigmoid(y).astype(o_ref.dtype)

    return kernel


def autoencoder_forward(x, params, *, out_dtype=None, batch_tile=None):
    """x: (B, D) in its native dtype (not cast/padded here).
    params: dict of weights/biases in (in, out) layout.
    out_dtype: output dtype (e.g. jnp.bfloat16 to halve store traffic)."""
    B, D = x.shape
    out_dtype = jnp.dtype(x.dtype) if out_dtype is None else jnp.dtype(out_dtype)
    f32 = jnp.float32

    # Weights are tiny (O(D*4) elements) -> keep f32, VMEM-resident.
    w1 = params["w1"].astype(f32); b1 = params["b1"].astype(f32)
    w2 = params["w2"].astype(f32); b2 = params["b2"].astype(f32)
    w3 = params["w3"].astype(f32); b3 = params["b3"].astype(f32)
    w4 = params["w4"].astype(f32); b4 = params["b4"].astype(f32)
    weights = (w1, b1, w2, b2, w3, b3, w4, b4)
    weight_bytes = sum(int(w.size) * w.dtype.itemsize for w in weights)

    x_item = jnp.dtype(x.dtype).itemsize
    out_item = out_dtype.itemsize

    # ---- generation-aware VMEM budget & batch tile ---------------------------
    vmem_cap = _vmem_capacity_bytes()
    vmem_limit = int(max(32 << 20, min(vmem_cap * 3 // 4, 112 << 20)))

    if batch_tile is None:
        # Per-row VMEM: double-buffered input + output tiles, plus ~2 (tb, D) f32
        # intermediates (y and the sigmoid temp) that live inside the kernel.
        per_row = D * (2 * x_item + 2 * out_item + 2 * 4)
        budget = max(1 << 20, vmem_limit - weight_bytes - (4 << 20))
        tb = budget // per_row
        tb = max(16, min(4096, (tb // 16) * 16))
    else:
        tb = max(8, (int(batch_tile) // 8) * 8)

    if tb >= B:
        tb = B                      # single full-array block (always a legal block shape)
        grid = (1,)
    else:
        grid = (pl.cdiv(B, tb),)    # partial last tile: rows independent, OOB never stored

    tile_map = lambda i: (i, 0)
    const2 = lambda i: (0, 0)       # weights: same block every step -> stay VMEM-resident

    in_specs = [pl.BlockSpec((tb, D), tile_map)] + \
               [pl.BlockSpec(w.shape, const2) for w in weights]
    out_specs = pl.BlockSpec((tb, D), tile_map)

    cost = pl.CostEstimate(
        flops=int(16 * B * D + 32 * B),
        transcendentals=int(B * D),
        bytes_accessed=int(B * D * (x_item + out_item) + weight_bytes),
    )

    kernel = _make_kernel(approx_sigmoid=(out_dtype == jnp.bfloat16))

    out = pl.pallas_call(
        kernel,
        out_shape=jax.ShapeDtypeStruct((B, D), out_dtype),
        grid=grid,
        in_specs=in_specs,
        out_specs=out_specs,
        compiler_params=pltpu.CompilerParams(
            dimension_semantics=("parallel",),
            vmem_limit_bytes=vmem_limit,
        ),
        cost_estimate=cost,
    )(x, *weights)

    return out                      # no slice: exact (B, D), no padding was applied


def init_params(key, input_dim):
    """PyTorch Linear weights are (out, in); we keep (in, out) so kernel does x @ W + b."""
    ks = jax.random.split(key, 8)

    def lin(kw, kb, fan_in, fan_out):
        bound = 1.0 / jnp.sqrt(jnp.float32(fan_in))
        w = jax.random.uniform(kw, (fan_in, fan_out), jnp.float32, -bound, bound)
        b = jax.random.uniform(kb, (1, fan_out), jnp.float32, -bound, bound)
        return w, b

    w1, b1 = lin(ks[0], ks[1], input_dim, 4)
    w2, b2 = lin(ks[2], ks[3], 4, 2)
    w3, b3 = lin(ks[4], ks[5], 2, 4)
    w4, b4 = lin(ks[6], ks[7], 4, input_dim)
    return {"w1": w1, "b1": b1, "w2": w2, "b2": b2,
            "w3": w3, "b3": b3, "w4": w4, "b4": b4}


def reference_forward(x, p):
    h = jnp.maximum(x @ p["w1"] + p["b1"], 0.0)
    h = jnp.maximum(h @ p["w2"] + p["b2"], 0.0)
    h = jnp.maximum(h @ p["w3"] + p["b3"], 0.0)
    return jax.nn.sigmoid(h @ p["w4"] + p["b4"])


if __name__ == "__main__":
    key = jax.random.PRNGKey(0)
    k_x, k_p, k_big = jax.random.split(key, 3)

    batch = 8
    input_dim = 16
    x = jax.random.uniform(k_x, (batch, input_dim), jnp.float32)
    params = init_params(k_p, input_dim)
    ref = reference_forward(x, params)

    # f32 path, single full-array block: tight correctness check.
    out = jax.block_until_ready(autoencoder_forward(x, params))
    assert out.shape == (batch, input_dim)
    assert out.dtype == jnp.float32
    assert jnp.allclose(out, ref, atol=1e-4, rtol=1e-4), "f32 mismatch vs reference"

    # bf16-output path (halves store traffic; approx sigmoid): looser check.
    out_bf16 = jax.block_until_ready(
        autoencoder_forward(x, params, out_dtype=jnp.bfloat16))
    assert out_bf16.shape == (batch, input_dim)
    assert out_bf16.dtype == jnp.bfloat16
    diff = jnp.max(jnp.abs(out_bf16.astype(jnp.float32) - ref))
    assert float(diff) < 5e-2, f"bf16 mismatch vs reference (max diff {float(diff)})"

    # Multi-tile grid with a partial last tile (no batch padding in the wrapper).
    big_b = 1000
    xb = jax.random.uniform(k_big, (big_b, input_dim), jnp.float32)
    refb = reference_forward(xb, params)
    outb = jax.block_until_ready(
        autoencoder_forward(xb, params, batch_tile=128))
    assert outb.shape == (big_b, input_dim)
    assert jnp.allclose(outb, refb, atol=1e-3, rtol=1e-3), "partial-tile mismatch"

    print("KERNEL_OK")
</pallas_src>

<mosaic_0001>
module attributes {stable_mosaic.version = 11 : i64} {
  func.func @kernel(%arg0: i32, %arg1: memref<8x16xf32, #tpu.memory_space<vmem>>, %arg2: memref<16x4xf32, #tpu.memory_space<vmem>>, %arg3: memref<1x4xf32, #tpu.memory_space<vmem>>, %arg4: memref<4x2xf32, #tpu.memory_space<vmem>>, %arg5: memref<1x2xf32, #tpu.memory_space<vmem>>, %arg6: memref<2x4xf32, #tpu.memory_space<vmem>>, %arg7: memref<1x4xf32, #tpu.memory_space<vmem>>, %arg8: memref<4x16xf32, #tpu.memory_space<vmem>>, %arg9: memref<1x16xf32, #tpu.memory_space<vmem>>, %arg10: memref<8x16xf32, #tpu.memory_space<vmem>>) attributes {dimension_semantics = [#tpu.dimension_semantics<parallel>], iteration_bounds = array<i64: 1>, scalar_prefetch = 0 : i64, scratch_operands = 0 : i64, tpu.core_type = #tpu.core_type<tc>, window_params = [{transform_indices = @transform_0, window_bounds = array<i64: 8, 16>}, {pipeline_mode = #tpu.pipeline_mode<synchronous>, transform_indices = @transform_1, window_bounds = array<i64: 16, 4>}, {pipeline_mode = #tpu.pipeline_mode<synchronous>, transform_indices = @transform_2, window_bounds = array<i64: 1, 4>}, {pipeline_mode = #tpu.pipeline_mode<synchronous>, transform_indices = @transform_3, window_bounds = array<i64: 4, 2>}, {pipeline_mode = #tpu.pipeline_mode<synchronous>, transform_indices = @transform_4, window_bounds = array<i64: 1, 2>}, {pipeline_mode = #tpu.pipeline_mode<synchronous>, transform_indices = @transform_5, window_bounds = array<i64: 2, 4>}, {pipeline_mode = #tpu.pipeline_mode<synchronous>, transform_indices = @transform_6, window_bounds = array<i64: 1, 4>}, {pipeline_mode = #tpu.pipeline_mode<synchronous>, transform_indices = @transform_7, window_bounds = array<i64: 4, 16>}, {pipeline_mode = #tpu.pipeline_mode<synchronous>, transform_indices = @transform_8, window_bounds = array<i64: 1, 16>}, {transform_indices = @transform_9, window_bounds = array<i64: 8, 16>}]} {
    %c0 = arith.constant 0 : index
    %c0_0 = arith.constant 0 : index
    %0 = vector.load %arg1[%c0, %c0_0] : memref<8x16xf32, #tpu.memory_space<vmem>>, vector<8x16xf32>
    %c0_1 = arith.constant 0 : index
    %c0_2 = arith.constant 0 : index
    %1 = vector.load %arg2[%c0_1, %c0_2] : memref<16x4xf32, #tpu.memory_space<vmem>>, vector<16x4xf32>
    %cst = arith.constant dense<0.000000e+00> : vector<8x4xf32>
    %2 = tpu.matmul %0, %1, %cst {dimension_numbers = #tpu.dot_dimension_numbers<[1], [0], [0], [1], [0, 0, 1, 1], [], []>} : vector<8x16xf32>, vector<16x4xf32>, vector<8x4xf32> -> vector<8x4xf32>
    %c0_3 = arith.constant 0 : index
    %c0_4 = arith.constant 0 : index
    %3 = vector.load %arg3[%c0_3, %c0_4] : memref<1x4xf32, #tpu.memory_space<vmem>>, vector<1x4xf32>
    %4 = vector.broadcast %3 : vector<1x4xf32> to vector<8x4xf32>
    %5 = arith.addf %2, %4 : vector<8x4xf32>
    %cst_5 = arith.constant 0.000000e+00 : f32
    %6 = vector.broadcast %cst_5 : f32 to vector<8x4xf32>
    %7 = arith.maximumf %5, %6 : vector<8x4xf32>
    %c0_6 = arith.constant 0 : index
    %c0_7 = arith.constant 0 : index
    %8 = vector.load %arg4[%c0_6, %c0_7] : memref<4x2xf32, #tpu.memory_space<vmem>>, vector<4x2xf32>
    %cst_8 = arith.constant dense<0.000000e+00> : vector<8x2xf32>
    %9 = tpu.matmul %7, %8, %cst_8 {dimension_numbers = #tpu.dot_dimension_numbers<[1], [0], [0], [1], [0, 0, 1, 1], [], []>} : vector<8x4xf32>, vector<4x2xf32>, vector<8x2xf32> -> vector<8x2xf32>
    %c0_9 = arith.constant 0 : index
    %c0_10 = arith.constant 0 : index
    %10 = vector.load %arg5[%c0_9, %c0_10] : memref<1x2xf32, #tpu.memory_space<vmem>>, vector<1x2xf32>
    %11 = vector.broadcast %10 : vector<1x2xf32> to vector<8x2xf32>
    %12 = arith.addf %9, %11 : vector<8x2xf32>
    %cst_11 = arith.constant 0.000000e+00 : f32
    %13 = vector.broadcast %cst_11 : f32 to vector<8x2xf32>
    %14 = arith.maximumf %12, %13 : vector<8x2xf32>
    %c0_12 = arith.constant 0 : index
    %c0_13 = arith.constant 0 : index
    %15 = vector.load %arg6[%c0_12, %c0_13] : memref<2x4xf32, #tpu.memory_space<vmem>>, vector<2x4xf32>
    %cst_14 = arith.constant dense<0.000000e+00> : vector<8x4xf32>
    %16 = tpu.matmul %14, %15, %cst_14 {dimension_numbers = #tpu.dot_dimension_numbers<[1], [0], [0], [1], [0, 0, 1, 1], [], []>} : vector<8x2xf32>, vector<2x4xf32>, vector<8x4xf32> -> vector<8x4xf32>
    %c0_15 = arith.constant 0 : index
    %c0_16 = arith.constant 0 : index
    %17 = vector.load %arg7[%c0_15, %c0_16] : memref<1x4xf32, #tpu.memory_space<vmem>>, vector<1x4xf32>
    %18 = vector.broadcast %17 : vector<1x4xf32> to vector<8x4xf32>
    %19 = arith.addf %16, %18 : vector<8x4xf32>
    %cst_17 = arith.constant 0.000000e+00 : f32
    %20 = vector.broadcast %cst_17 : f32 to vector<8x4xf32>
    %21 = arith.maximumf %19, %20 : vector<8x4xf32>
    %c0_18 = arith.constant 0 : index
    %c0_19 = arith.constant 0 : index
    %22 = vector.load %arg8[%c0_18, %c0_19] : memref<4x16xf32, #tpu.memory_space<vmem>>, vector<4x16xf32>
    %cst_20 = arith.constant dense<0.000000e+00> : vector<8x16xf32>
    %23 = tpu.matmul %21, %22, %cst_20 {dimension_numbers = #tpu.dot_dimension_numbers<[1], [0], [0], [1], [0, 0, 1, 1], [], []>} : vector<8x4xf32>, vector<4x16xf32>, vector<8x16xf32> -> vector<8x16xf32>
    %c0_21 = arith.constant 0 : index
    %c0_22 = arith.constant 0 : index
    %24 = vector.load %arg9[%c0_21, %c0_22] : memref<1x16xf32, #tpu.memory_space<vmem>>, vector<1x16xf32>
    %25 = vector.broadcast %24 : vector<1x16xf32> to vector<8x16xf32>
    %26 = arith.addf %23, %25 : vector<8x16xf32>
    %27 = arith.negf %26 : vector<8x16xf32>
    %28 = math.exp %27 : vector<8x16xf32>
    %cst_23 = arith.constant 1.000000e+00 : f32
    %29 = vector.broadcast %cst_23 : f32 to vector<8x16xf32>
    %30 = arith.addf %29, %28 : vector<8x16xf32>
    %31 = arith.divf %29, %30 : vector<8x16xf32>
    %c0_24 = arith.constant 0 : index
    %c0_25 = arith.constant 0 : index
    %32 = vector.load %arg10[%c0_24, %c0_25] : memref<8x16xf32, #tpu.memory_space<vmem>>, vector<8x16xf32>
    tpu.vector_store %arg10[%c0_24, %c0_25], %31 {strides = array<i32>} : memref<8x16xf32, #tpu.memory_space<vmem>>, vector<8x16xf32>,
    return
  }
  func.func @transform_0(%arg0: i32) -> (i32, i32) {
    %c0_i32 = arith.constant 0 : i32
    %c0_i32_0 = arith.constant 0 : i32
    return %arg0, %c0_i32 : i32, i32
  }
  func.func @transform_1(%arg0: i32) -> (i32, i32) {
    %c0_i32 = arith.constant 0 : i32
    %c0_i32_0 = arith.constant 0 : i32
    %c0_i32_1 = arith.constant 0 : i32
    return %c0_i32, %c0_i32_0 : i32, i32
  }
  func.func @transform_2(%arg0: i32) -> (i32, i32) {
    %c0_i32 = arith.constant 0 : i32
    %c0_i32_0 = arith.constant 0 : i32
    %c0_i32_1 = arith.constant 0 : i32
    return %c0_i32, %c0_i32_0 : i32, i32
  }
  func.func @transform_3(%arg0: i32) -> (i32, i32) {
    %c0_i32 = arith.constant 0 : i32
    %c0_i32_0 = arith.constant 0 : i32
    %c0_i32_1 = arith.constant 0 : i32
    return %c0_i32, %c0_i32_0 : i32, i32
  }
  func.func @transform_4(%arg0: i32) -> (i32, i32) {
    %c0_i32 = arith.constant 0 : i32
    %c0_i32_0 = arith.constant 0 : i32
    %c0_i32_1 = arith.constant 0 : i32
    return %c0_i32, %c0_i32_0 : i32, i32
  }
  func.func @transform_5(%arg0: i32) -> (i32, i32) {
    %c0_i32 = arith.constant 0 : i32
    %c0_i32_0 = arith.constant 0 : i32
    %c0_i32_1 = arith.constant 0 : i32
    return %c0_i32, %c0_i32_0 : i32, i32
  }
  func.func @transform_6(%arg0: i32) -> (i32, i32) {
    %c0_i32 = arith.constant 0 : i32
    %c0_i32_0 = arith.constant 0 : i32
    %c0_i32_1 = arith.constant 0 : i32
    return %c0_i32, %c0_i32_0 : i32, i32
  }
  func.func @transform_7(%arg0: i32) -> (i32, i32) {
    %c0_i32 = arith.constant 0 : i32
    %c0_i32_0 = arith.constant 0 : i32
    %c0_i32_1 = arith.constant 0 : i32
    return %c0_i32, %c0_i32_0 : i32, i32
  }
  func.func @transform_8(%arg0: i32) -> (i32, i32) {
    %c0_i32 = arith.constant 0 : i32
    %c0_i32_0 = arith.constant 0 : i32
    %c0_i32_1 = arith.constant 0 : i32
    return %c0_i32, %c0_i32_0 : i32, i32
  }
  func.func @transform_9(%arg0: i32) -> (i32, i32) {
    %c0_i32 = arith.constant 0 : i32
    %c0_i32_0 = arith.constant 0 : i32
    return %arg0, %c0_i32 : i32, i32
  }
}

</mosaic_0001>

<llo_original>
// kernel: tpu_custom_call.1
$region0: #{tpu_custom_call.1}
  #allocation0 [shape = 'u32[]', space=smem, size = 0x4, offset = 0x4, fixed_abs, tag = 'smem constant byte address 0x4 - core index']
  #allocation1 [shape = 'u32[72,128]{1,0:T(1,128)}', space=vmem, size = 0x9000, scoped, tag = 'internal scratch']
  %s0 = inlined_call_operand.vmem [shape: f32[8,16], index: 0, kind: input, shape index: {}]
  %s1 = inlined_call_operand.vmem [shape: f32[16,4], index: 1, kind: input, shape index: {}]
  %s2 = inlined_call_operand.vmem [shape: f32[1,4], index: 2, kind: input, shape index: {}]
  %s3 = inlined_call_operand.vmem [shape: f32[4,2], index: 3, kind: input, shape index: {}]
  %s4 = inlined_call_operand.vmem [shape: f32[1,2], index: 4, kind: input, shape index: {}]
  %s5 = inlined_call_operand.vmem [shape: f32[2,4], index: 5, kind: input, shape index: {}]
  %s6 = inlined_call_operand.vmem [shape: f32[1,4], index: 6, kind: input, shape index: {}]
  %s7 = inlined_call_operand.vmem [shape: f32[4,16], index: 7, kind: input, shape index: {}]
  %s8 = inlined_call_operand.vmem [shape: f32[1,16], index: 8, kind: input, shape index: {}]
  %s9 = inlined_call_operand.hbm [shape: f32[8,16], index: 9, kind: output, shape index: {}]
  %s10 = sld [smem:[#allocation0]]
  $region46: #{tpu_custom_call.1} parent=0
    _
  %s12 = ssub.s32 1, %s10
  %s13 = scalar_select 0, %s12, %s10
  $region1: #{tpu_custom_call.1} parent=0
    #allocation2 [shape = 'u8[4096]{0}', space=vmem, size = 0x1000, scoped, tag = 'output window, operand 0, single buffered']
    #allocation3 [shape = 's32[1]{0}', space=sflag, size = 0x4, scoped, tag = 'scoped memory for tpu_custom_call.1']
    %14 = vsyncpa [#allocation3], 0
    // Predicated region
    $region2: #{tpu_custom_call.1} parent=1 // pred_check
      _
    $region3: #{tpu_custom_call.1} parent=1 // pred_check_branch
      %16 = sbr.rel (0) target = $region5
    $region4: #{tpu_custom_call.1} parent=1 // pred_region
      _
    $region5: #{tpu_custom_call.1} parent=1 // pred_fallthru
      _
    // Predicated region
    $region6: #{tpu_custom_call.1} parent=1 // pred_check
      _
    $region7: #{tpu_custom_call.1} parent=1 // pred_check_branch
      %18 = sbr.rel (0) target = $region9
    $region8: #{tpu_custom_call.1} parent=1 // pred_region
      _
    $region9: #{tpu_custom_call.1} parent=1 // pred_fallthru
      _
    // Predicated region
    $region10: #{tpu_custom_call.1} parent=1 // pred_check
      _
    $region11: #{tpu_custom_call.1} parent=1 // pred_check_branch
      %20 = sbr.rel (0) target = $region13
    $region12: #{tpu_custom_call.1} parent=1 // pred_region
      _
    $region13: #{tpu_custom_call.1} parent=1 // pred_fallthru
      _
    // Predicated region
    $region14: #{tpu_custom_call.1} parent=1 // pred_check
      _
    $region15: #{tpu_custom_call.1} parent=1 // pred_check_branch
      %22 = sbr.rel (0) target = $region17
    $region16: #{tpu_custom_call.1} parent=1 // pred_region
      _
    $region17: #{tpu_custom_call.1} parent=1 // pred_fallthru
      _
    // Predicated region
    $region18: #{tpu_custom_call.1} parent=1 // pred_check
      _
    $region19: #{tpu_custom_call.1} parent=1 // pred_check_branch
      %24 = sbr.rel (0) target = $region21
    $region20: #{tpu_custom_call.1} parent=1 // pred_region
      _
    $region21: #{tpu_custom_call.1} parent=1 // pred_fallthru
      _
    // Predicated region
    $region22: #{tpu_custom_call.1} parent=1 // pred_check
      _
    $region23: #{tpu_custom_call.1} parent=1 // pred_check_branch
      %26 = sbr.rel (0) target = $region25
    $region24: #{tpu_custom_call.1} parent=1 // pred_region
      _
    $region25: #{tpu_custom_call.1} parent=1 // pred_fallthru
      _
    // Predicated region
    $region26: #{tpu_custom_call.1} parent=1 // pred_check
      _
    $region27: #{tpu_custom_call.1} parent=1 // pred_check_branch
      %28 = sbr.rel (0) target = $region29
    $region28: #{tpu_custom_call.1} parent=1 // pred_region
      _
    $region29: #{tpu_custom_call.1} parent=1 // pred_fallthru
      _
    // Predicated region
    $region30: #{tpu_custom_call.1} parent=1 // pred_check
      _
    $region31: #{tpu_custom_call.1} parent=1 // pred_check_branch
      %30 = sbr.rel (0) target = $region33
    $region32: #{tpu_custom_call.1} parent=1 // pred_region
      _
    $region33: #{tpu_custom_call.1} parent=1 // pred_fallthru
      _
    // Predicated region
    $region34: #{tpu_custom_call.1} parent=1 // pred_check
      _
    $region35: #{tpu_custom_call.1} parent=1 // pred_check_branch
      %32 = sbr.rel (0) target = $region37
    $region36: #{tpu_custom_call.1} parent=1 // pred_region
      _
    $region37: #{tpu_custom_call.1} parent=1 // pred_fallthru
      _
    %v33 = vld [vmem:[%s0] sm:$0xff]
    %v34 = vld [vmem:[%s1] sm:$0xff]
    %v35 = vld [vmem:[%s1 + $0x8] sm:$0xff]
    %v36 = vld [vmem:[%s2] sm:$0x1]
    %v38 = vperm.slane %v36, 0
    %vm40 = vcmask 130048
    %v42 = vsel %vm40, %v33, 0
    %44 = vmatpush.msra.mxu0 0.0
    %45 = vmatpush.msra.mxu0 0.0
    %46 = vmatpush.msra.mxu0 0.0
    %47 = vmatpush.msra.mxu0 0.0
    %48 = vmatpush.msra.mxu0 0.0
    %49 = vmatpush.msra.mxu0 0.0
    %50 = vmatpush.msra.mxu0 0.0
    %51 = vmatpush.msra.mxu0 0.0
    %52 = vmatpush.msra.mxu0 0.0
    %53 = vmatpush.msra.mxu0 0.0
    %54 = vmatpush.msra.mxu0 0.0
    %55 = vmatpush.msra.mxu0 0.0
    %56 = vmatpush.msra.mxu0 0.0
    %57 = vmatpush.msra.mxu0 0.0
    %58 = vmatpush.msra.mxu0 %v35
    %59 = vmatpush.msra.mxu0 %v34
    %60 = vmatmul.f32.gmra.mxu0 %v42
    %v61 = vpop.f32.mrf.mxu0
    %v62 = vadd.f32 %v38, %v61
    %63 = vdwg.mxu0
    %v64 = vmax.f32 %v62, 0.0
    %v65 = vld [vmem:[%s3] sm:$0xf]
    %v66 = vld [vmem:[%s4] sm:$0x1]
    %v68 = vperm.slane %v66, 0
    %vm70 = vcmask 31744
    %v72 = vsel %vm70, %v64, 0
    %vm74 = vcmask 1043456
    %v76 = vsel %vm74, %v65, 0
    %78 = vmatpush.msra.mxu0 0.0
    %79 = vmatpush.msra.mxu0 0.0
    %80 = vmatpush.msra.mxu0 0.0
    %81 = vmatpush.msra.mxu0 0.0
    %82 = vmatpush.msra.mxu0 0.0
    %83 = vmatpush.msra.mxu0 0.0
    %84 = vmatpush.msra.mxu0 0.0
    %85 = vmatpush.msra.mxu0 0.0
    %86 = vmatpush.msra.mxu0 0.0
    %87 = vmatpush.msra.mxu0 0.0
    %88 = vmatpush.msra.mxu0 0.0
    %89 = vmatpush.msra.mxu0 0.0
    %90 = vmatpush.msra.mxu0 0.0
    %91 = vmatpush.msra.mxu0 0.0
    %92 = vmatpush.msra.mxu0 0.0
    %93 = vmatpush.msra.mxu0 %v76
    %94 = vmatmul.f32.gmra.mxu0 %v72
    %v95 = vpop.f32.mrf.mxu0
    %v96 = vadd.f32 %v68, %v95
    %97 = vdwg.mxu0
    %v98 = vmax.f32 %v96, 0.0
    %v99 = vld [vmem:[%s5] sm:$0x3]
    %v100 = vld [vmem:[%s6] sm:$0x1]
    %v102 = vperm.slane %v100, 0
    %vm104 = vcmask 15360
    %v106 = vsel %vm104, %v98, 0
    %vm108 = vcmask 1041408
    %v110 = vsel %vm108, %v99, 0
    %112 = vmatpush.msra.mxu0 0.0
    %113 = vmatpush.msra.mxu0 0.0
    %114 = vmatpush.msra.mxu0 0.0
    %115 = vmatpush.msra.mxu0 0.0
    %116 = vmatpush.msra.mxu0 0.0
    %117 = vmatpush.msra.mxu0 0.0
    %118 = vmatpush.msra.mxu0 0.0
    %119 = vmatpush.msra.mxu0 0.0
    %120 = vmatpush.msra.mxu0 0.0
    %121 = vmatpush.msra.mxu0 0.0
    %122 = vmatpush.msra.mxu0 0.0
    %123 = vmatpush.msra.mxu0 0.0
    %124 = vmatpush.msra.mxu0 0.0
    %125 = vmatpush.msra.mxu0 0.0
    %126 = vmatpush.msra.mxu0 0.0
    %127 = vmatpush.msra.mxu0 %v110
    %128 = vmatmul.f32.gmra.mxu0 %v106
    %v129 = vpop.f32.mrf.mxu0
    %v130 = vadd.f32 %v102, %v129
    %131 = vdwg.mxu0
    %v132 = vmax.f32 %v130, 0.0
    %v133 = vld [vmem:[%s7] sm:$0xf]
    %v134 = vld [vmem:[%s8] sm:$0x1]
    %v136 = vperm.slane %v134, 0
    %v139 = vsel %vm70, %v132, 0
    %v142 = vsel %vm74, %v133, 0
    %144 = vmatpush.msra.mxu0 0.0
    %145 = vmatpush.msra.mxu0 0.0
    %146 = vmatpush.msra.mxu0 0.0
    %147 = vmatpush.msra.mxu0 0.0
    %148 = vmatpush.msra.mxu0 0.0
    %149 = vmatpush.msra.mxu0 0.0
    %150 = vmatpush.msra.mxu0 0.0
    %151 = vmatpush.msra.mxu0 0.0
    %152 = vmatpush.msra.mxu0 0.0
    %153 = vmatpush.msra.mxu0 0.0
    %154 = vmatpush.msra.mxu0 0.0
    %155 = vmatpush.msra.mxu0 0.0
    %156 = vmatpush.msra.mxu0 0.0
    %157 = vmatpush.msra.mxu0 0.0
    %158 = vmatpush.msra.mxu0 0.0
    %159 = vmatpush.msra.mxu0 %v142
    %160 = vmatmul.f32.gmra.mxu0 %v139
    %v161 = vpop.f32.mrf.mxu0
    %v162 = vadd.f32 %v136, %v161
    %163 = vdwg.mxu0
    %v164 = vxor.u32 %v162, 2147483648
    %v165 = vmul.f32 %v164, 1.442695
    %v166 = vpow.pop %v165
    %v167 = vadd.f32 %v166, 1.0
    %v168 = vrcp.pop %v167
    %v169 = vmul.f32 %v167, %v168
    %v170 = vsub.f32 1.0, %v169
    %v171 = vmul.f32 %v168, %v170
    %v172 = vadd.f32 %v168, %v171
    %vm173 = vweird.f32 %v167
    %vm174 = vweird.f32 %v168
    %vm175 = vmor %vm173, %vm174
    %v176 = vsel %vm175, %v168, %v172
    %v177 = vand.u32 2147483647, %v167
    %vm178 = vcmp.eq.f32.partialorder %v177, 8.507059e+37
    %v179 = vand.u32 %v167, 2147483648
    %v180 = vor.u32 1.1754944e-38, %v179
    %v181 = vsel %vm178, %v180, %v176
    %v182 = vmul.f32 1.0, %v181
    %183 = vst.msk [vmem:[#allocation2] sm:$0xff] %vm40, %v182
    // Predicated region
    $region38: #{tpu_custom_call.1} parent=1 // pred_check
      _
    $region39: #{tpu_custom_call.1} parent=1 // pred_check_branch
      %185 = sbr.rel (0) target = $region41
    $region40: #{tpu_custom_call.1} parent=1 // pred_region
      %187 = vsyncadd [#allocation3], 0
      %s189 = sshll.u32 [#allocation2], 4
      %s190 = int_to_ptr.vmem [resolvable:$true] %s189
      %s191 = sshll.u32 %s9, 4
      %s192 = int_to_ptr.hbm [resolvable:$true] %s191
      %194 = dma.vmem_to_hbm [thread:$0]  %s190, 128, %s192, [#allocation3]
    $region41: #{tpu_custom_call.1} parent=1 // pred_fallthru
      _
    // Predicated region
    $region42: #{tpu_custom_call.1} parent=1 // pred_check
      _
    $region43: #{tpu_custom_call.1} parent=1 // pred_check_branch
      %196 = sbr.rel (0) target = $region45
    $region44: #{tpu_custom_call.1} parent=1 // pred_region
      %198 = dma.done [#allocation3], 128
    $region45: #{tpu_custom_call.1} parent=1 // pred_fallthru
      _
    %199 = vsyncpa [#allocation3], 1

</llo_original>
